<compile_context>
chip_gen: v5e
topology: v5e:2x2
jax: 0.10.0
libtpu: 0.0.40
codegen_flags: <defaults>
</compile_context>

<pallas_src>
import functools

import jax
import jax.numpy as jnp
from jax.experimental import pallas as pl
from jax.experimental.pallas import tpu as pltpu

_LANES = 128
_MAX_BLOCK_ROWS = 8192      # 8192 * 128 * 4 B = 4 MiB per f32 input block
_PAD_LOGIT = -30000.0       # sigmoid(pad) == 0 -> padded elements add 0 to all sums


def _cdiv(a, b):
    return -(-a // b)


def _dice_bce_partial_kernel(x_ref, t_ref, out_ref, *, block_rows, total_rows,
                             needs_mask):
    """Per-block partial sums [p*t, p, t, bce], reduced over the row axis."""
    x = x_ref[...].astype(jnp.float32)
    t = t_ref[...].astype(jnp.float32)

    if needs_mask:
        # Partial last grid block: rows >= total_rows are out-of-bounds reads
        # (undefined data).  Sanitize BEFORE any transcendental, then zero the
        # contributions that do not auto-cancel (t is zeroed, so p*t and t do).
        row0 = pl.program_id(0) * block_rows
        rid = jax.lax.broadcasted_iota(jnp.int32, x.shape, 0) + row0
        mask = rid < total_rows
        x = jnp.where(mask, x, 0.0)
        t = jnp.where(mask, t, 0.0)

    # Shared-transcendental sigmoid + BCE (numerically stable softplus form).
    e = jnp.exp(-jnp.abs(x))                 # EUP push 1
    sp = jnp.log(1.0 + e)                    # EUP push 2   (softplus(-|x|))
    r = 1.0 / (1.0 + e)                      # EUP push 3 (+ VALU refine)
    p = jnp.where(x >= 0, r, e * r)          # sigmoid(x)

    # Matches torch.nn.functional.binary_cross_entropy: log terms clamped at
    # -100 *before* multiplying by t / (1-t) (avoids 0 * -inf).
    log_p = jnp.maximum(-(jnp.maximum(-x, 0.0) + sp), -100.0)
    log_1mp = jnp.maximum(-(jnp.maximum(x, 0.0) + sp), -100.0)
    bce = -(t * log_p + (1.0 - t) * log_1mp)

    if needs_mask:
        p = jnp.where(mask, p, 0.0)
        bce = jnp.where(mask, bce, 0.0)

    # Single (4, 128) lane-dense partial-sum slab per block.
    out_ref[0] = jnp.concatenate(
        [jnp.sum(p * t, axis=0, keepdims=True),
         jnp.sum(p, axis=0, keepdims=True),
         jnp.sum(t, axis=0, keepdims=True),
         jnp.sum(bce, axis=0, keepdims=True)],
        axis=0,
    )


def _run_reduction(x2d, t2d, block_rows):
    rows = x2d.shape[0]
    num_blocks = _cdiv(rows, block_rows)
    needs_mask = (rows % block_rows) != 0

    kernel = functools.partial(
        _dice_bce_partial_kernel,
        block_rows=block_rows,
        total_rows=rows,
        needs_mask=needs_mask,
    )

    in_spec = pl.BlockSpec((block_rows, _LANES), lambda i: (i, 0))
    out_spec = pl.BlockSpec((1, 4, _LANES), lambda i: (i, 0, 0))

    n_elems = rows * _LANES
    in_bytes = x2d.size * x2d.dtype.itemsize + t2d.size * t2d.dtype.itemsize
    out_bytes = num_blocks * 4 * _LANES * 4
    cost = pl.CostEstimate(
        flops=16 * n_elems,
        transcendentals=3 * n_elems,
        bytes_accessed=in_bytes + out_bytes,
    )

    return pl.pallas_call(
        kernel,
        out_shape=jax.ShapeDtypeStruct((num_blocks, 4, _LANES), jnp.float32),
        grid_spec=pltpu.PrefetchScalarGridSpec(
            num_scalar_prefetch=0,
            grid=(num_blocks,),
            in_specs=[in_spec, in_spec],
            out_specs=out_spec,
        ),
        compiler_params=pltpu.CompilerParams(
            dimension_semantics=("parallel",),
            vmem_limit_bytes=32 * 1024 * 1024,
        ),
        cost_estimate=cost,
    )(x2d, t2d)


@functools.partial(
    jax.jit, static_argnames=("w_dice", "w_bce", "smooth", "max_block_rows"))
def dice_bce_loss(logits, targets, w_dice=0.5, w_bce=0.5, smooth=1.0,
                  max_block_rows=_MAX_BLOCK_ROWS):
    """JAX/Pallas equivalent of DiceBCELoss.forward(inputs, targets)."""
    x = jnp.reshape(logits, (-1,))    # keep source dtype (kernel upcasts)
    t = jnp.reshape(targets, (-1,))
    n = x.shape[0]
    if n == 0:                        # guard: empty input would divide by zero
        return jnp.float32(w_dice * 0.0)

    rem = n % _LANES
    if rem != 0:
        # Rare lane-ragged case: pad the <128-element tail so the flat array
        # reshapes to [rows, 128].  Padded logits are very negative and padded
        # targets 0, so they contribute exactly 0 to every partial sum.
        pad = _LANES - rem
        x = jnp.pad(x, (0, pad), constant_values=_PAD_LOGIT)
        t = jnp.pad(t, (0, pad))

    rows = x.shape[0] // _LANES
    x2 = x.reshape(rows, _LANES)      # pure bitcast in the common case
    t2 = t.reshape(rows, _LANES)

    # Big blocks to amortize per-step overhead; a partial last block is handled
    # by in-kernel row masking, so no row-padding copy is ever made.
    if rows <= max_block_rows:
        block_rows = rows             # single block; equals full dim -> legal
    else:
        block_rows = max_block_rows   # multiple of 8

    partials = _run_reduction(x2, t2, block_rows)
    sums = jnp.sum(partials, axis=(0, 2))  # (4,)
    intersection, p_sum, t_sum, bce_sum = sums[0], sums[1], sums[2], sums[3]

    dice_loss = 1.0 - (2.0 * intersection + smooth) / (p_sum + t_sum + smooth)
    bce = bce_sum / jnp.float32(n)
    return bce * w_bce + dice_loss * w_dice


def _reference(logits, targets, w_dice=0.5, w_bce=0.5, smooth=1.0):
    """Pure-JAX torch-parity reference (naive log with -100 clamps)."""
    p = jax.nn.sigmoid(jnp.reshape(logits, (-1,)).astype(jnp.float32))
    t = jnp.reshape(targets, (-1,)).astype(jnp.float32)
    inter = jnp.sum(p * t)
    dice_loss = 1.0 - (2.0 * inter + smooth) / (jnp.sum(p) + jnp.sum(t) + smooth)
    bce = jnp.mean(
        -(t * jnp.maximum(jnp.log(p), -100.0)
          + (1.0 - t) * jnp.maximum(jnp.log(1.0 - p), -100.0))
    )
    return bce * w_bce + dice_loss * w_dice


if __name__ == "__main__":
    key = jax.random.PRNGKey(0)
    k1, k2, k3, k4, k5, k6 = jax.random.split(key, 6)

    # 1) NCHW prediction logits / binary masks, lane-aligned (no pad, no mask).
    shape = (2, 4, 16, 16)
    logits = jax.random.normal(k1, shape, dtype=jnp.float32) * 2.0
    targets = (jax.random.uniform(k2, shape) > 0.5).astype(jnp.float32)

    loss = jax.block_until_ready(dice_bce_loss(logits, targets))
    ref = _reference(logits, targets)
    assert jnp.allclose(loss, ref, rtol=1e-5, atol=1e-5), (loss, ref)

    # 2) Non-lane-aligned shape + bf16 logits: exercises the tiny tail-pad path
    #    and the no-wrapper-upcast path (kernel upcasts after load).
    shape2 = (2, 3, 17, 19)
    logits2 = (jax.random.normal(k3, shape2) * 2.0).astype(jnp.bfloat16)
    targets2 = (jax.random.uniform(k4, shape2) > 0.5).astype(jnp.float32)

    loss2 = jax.block_until_ready(dice_bce_loss(logits2, targets2))
    ref2 = _reference(logits2, targets2)
    assert jnp.allclose(loss2, ref2, rtol=1e-5, atol=1e-5), (loss2, ref2)

    # 3) Multi-block grid with a partial (masked) last block: rows=20, block=8.
    shape3 = (2, 10, 128)
    logits3 = jax.random.normal(k5, shape3, dtype=jnp.float32) * 3.0
    targets3 = (jax.random.uniform(k6, shape3) > 0.5).astype(jnp.float32)

    loss3 = jax.block_until_ready(dice_bce_loss(logits3, targets3, max_block_rows=8))
    ref3 = _reference(logits3, targets3)
    assert jnp.allclose(loss3, ref3, rtol=1e-5, atol=1e-5), (loss3, ref3)

    print("KERNEL_OK")
</pallas_src>

<mosaic_0001>
module attributes {stable_mosaic.version = 11 : i64} {
  func.func @_dice_bce_partial_kernel(%arg0: i32, %arg1: memref<16x128xf32, #tpu.memory_space<vmem>>, %arg2: memref<16x128xf32, #tpu.memory_space<vmem>>, %arg3: memref<1x4x128xf32, #tpu.memory_space<vmem>>) attributes {dimension_semantics = [#tpu.dimension_semantics<parallel>], iteration_bounds = array<i64: 1>, scalar_prefetch = 0 : i64, scratch_operands = 0 : i64, tpu.core_type = #tpu.core_type<tc>, window_params = [{transform_indices = @transform_0, window_bounds = array<i64: 16, 128>}, {transform_indices = @transform_1, window_bounds = array<i64: 16, 128>}, {transform_indices = @transform_2, window_bounds = array<i64: 1, 4, 128>}]} {
    %c0 = arith.constant 0 : index
    %c0_0 = arith.constant 0 : index
    %0 = vector.load %arg1[%c0, %c0_0] : memref<16x128xf32, #tpu.memory_space<vmem>>, vector<16x128xf32>
    %c0_1 = arith.constant 0 : index
    %c0_2 = arith.constant 0 : index
    %1 = vector.load %arg2[%c0_1, %c0_2] : memref<16x128xf32, #tpu.memory_space<vmem>>, vector<16x128xf32>
    %2 = math.absf %0 : vector<16x128xf32>
    %cst = arith.constant 0.000000e+00 : f32
    %3 = vector.broadcast %cst : f32 to vector<16x128xf32>
    %4 = arith.subf %3, %2 : vector<16x128xf32>
    %5 = math.exp %4 : vector<16x128xf32>
    %cst_3 = arith.constant 1.000000e+00 : f32
    %6 = vector.broadcast %cst_3 : f32 to vector<16x128xf32>
    %7 = arith.addf %6, %5 : vector<16x128xf32>
    %8 = math.log %7 : vector<16x128xf32>
    %cst_4 = arith.constant 1.000000e+00 : f32
    %9 = vector.broadcast %cst_4 : f32 to vector<16x128xf32>
    %10 = arith.addf %9, %5 : vector<16x128xf32>
    %cst_5 = arith.constant 1.000000e+00 : f32
    %11 = vector.broadcast %cst_5 : f32 to vector<16x128xf32>
    %12 = arith.divf %11, %10 : vector<16x128xf32>
    %cst_6 = arith.constant 0.000000e+00 : f32
    %13 = vector.broadcast %cst_6 : f32 to vector<16x128xf32>
    %14 = arith.cmpf oge, %0, %13 : vector<16x128xf32>
    %15 = arith.mulf %5, %12 : vector<16x128xf32>
    %16 = arith.select %14, %12, %15 : vector<16x128xi1>, vector<16x128xf32>
    %cst_7 = arith.constant 0.000000e+00 : f32
    %17 = vector.broadcast %cst_7 : f32 to vector<16x128xf32>
    %18 = arith.subf %17, %0 : vector<16x128xf32>
    %cst_8 = arith.constant 0.000000e+00 : f32
    %19 = vector.broadcast %cst_8 : f32 to vector<16x128xf32>
    %20 = arith.maximumf %18, %19 : vector<16x128xf32>
    %21 = arith.addf %20, %8 : vector<16x128xf32>
    %cst_9 = arith.constant 0.000000e+00 : f32
    %22 = vector.broadcast %cst_9 : f32 to vector<16x128xf32>
    %23 = arith.subf %22, %21 : vector<16x128xf32>
    %cst_10 = arith.constant -1.000000e+02 : f32
    %24 = vector.broadcast %cst_10 : f32 to vector<16x128xf32>
    %25 = arith.maximumf %23, %24 : vector<16x128xf32>
    %cst_11 = arith.constant 0.000000e+00 : f32
    %26 = vector.broadcast %cst_11 : f32 to vector<16x128xf32>
    %27 = arith.maximumf %0, %26 : vector<16x128xf32>
    %28 = arith.addf %27, %8 : vector<16x128xf32>
    %cst_12 = arith.constant 0.000000e+00 : f32
    %29 = vector.broadcast %cst_12 : f32 to vector<16x128xf32>
    %30 = arith.subf %29, %28 : vector<16x128xf32>
    %cst_13 = arith.constant -1.000000e+02 : f32
    %31 = vector.broadcast %cst_13 : f32 to vector<16x128xf32>
    %32 = arith.maximumf %30, %31 : vector<16x128xf32>
    %33 = arith.mulf %1, %25 : vector<16x128xf32>
    %cst_14 = arith.constant 1.000000e+00 : f32
    %34 = vector.broadcast %cst_14 : f32 to vector<16x128xf32>
    %35 = arith.subf %34, %1 : vector<16x128xf32>
    %36 = arith.mulf %35, %32 : vector<16x128xf32>
    %37 = arith.addf %33, %36 : vector<16x128xf32>
    %cst_15 = arith.constant 0.000000e+00 : f32
    %38 = vector.broadcast %cst_15 : f32 to vector<16x128xf32>
    %39 = arith.subf %38, %37 : vector<16x128xf32>
    %40 = arith.mulf %16, %1 : vector<16x128xf32>
    %cst_16 = arith.constant dense<0.000000e+00> : vector<128xf32>
    %41 = vector.multi_reduction <add>, %40, %cst_16 [0] : vector<16x128xf32> to vector<128xf32>
    %42 = vector.shape_cast %41 : vector<128xf32> to vector<1x128xf32>
    %cst_17 = arith.constant dense<0.000000e+00> : vector<128xf32>
    %43 = vector.multi_reduction <add>, %16, %cst_17 [0] : vector<16x128xf32> to vector<128xf32>
    %44 = vector.shape_cast %43 : vector<128xf32> to vector<1x128xf32>
    %cst_18 = arith.constant dense<0.000000e+00> : vector<128xf32>
    %45 = vector.multi_reduction <add>, %1, %cst_18 [0] : vector<16x128xf32> to vector<128xf32>
    %46 = vector.shape_cast %45 : vector<128xf32> to vector<1x128xf32>
    %cst_19 = arith.constant dense<0.000000e+00> : vector<128xf32>
    %47 = vector.multi_reduction <add>, %39, %cst_19 [0] : vector<16x128xf32> to vector<128xf32>
    %48 = vector.shape_cast %47 : vector<128xf32> to vector<1x128xf32>
    %49 = tpu.concatenate %42, %44, %46, %48 in 0 : vector<1x128xf32>, vector<1x128xf32>, vector<1x128xf32>, vector<1x128xf32> -> vector<4x128xf32>
    %c0_20 = arith.constant 0 : index
    %c0_21 = arith.constant 0 : index
    %c0_22 = arith.constant 0 : index
    %50 = vector.load %arg3[%c0_20, %c0_21, %c0_22] : memref<1x4x128xf32, #tpu.memory_space<vmem>>, vector<1x4x128xf32>
    %51 = vector.shape_cast %50 : vector<1x4x128xf32> to vector<4x128xf32>
    %52 = vector.shape_cast %49 : vector<4x128xf32> to vector<1x4x128xf32>
    tpu.vector_store %arg3[%c0_20, %c0_21, %c0_22], %52 {strides = array<i32>} : memref<1x4x128xf32, #tpu.memory_space<vmem>>, vector<1x4x128xf32>,
    return
  }
  func.func @transform_0(%arg0: i32) -> (i32, i32) {
    %c0_i32 = arith.constant 0 : i32
    %c0_i32_0 = arith.constant 0 : i32
    return %arg0, %c0_i32 : i32, i32
  }
  func.func @transform_1(%arg0: i32) -> (i32, i32) {
    %c0_i32 = arith.constant 0 : i32
    %c0_i32_0 = arith.constant 0 : i32
    return %arg0, %c0_i32 : i32, i32
  }
  func.func @transform_2(%arg0: i32) -> (i32, i32, i32) {
    %c0_i32 = arith.constant 0 : i32
    %c0_i32_0 = arith.constant 0 : i32
    %c0_i32_1 = arith.constant 0 : i32
    return %arg0, %c0_i32, %c0_i32_0 : i32, i32, i32
  }
}

</mosaic_0001>

<llo_original>
// kernel: dice_bce_loss.1
$region0: #{dice_bce_loss.1}
  #allocation0 [shape = 'u32[]', space=smem, size = 0x4, offset = 0x4, fixed_abs, tag = 'smem constant byte address 0x4 - core index']
  #allocation1 [shape = 'u32[72,128]{1,0:T(1,128)}', space=vmem, size = 0x9000, scoped, tag = 'internal scratch']
  %s0 = inlined_call_operand.vmem [shape: f32[16,128], index: 0, kind: input, shape index: {}]
  %s1 = inlined_call_operand.vmem [shape: f32[16,128], index: 1, kind: input, shape index: {}]
  %s2 = inlined_call_operand.vmem [shape: f32[1,4,128], index: 2, kind: output, shape index: {}]
  %s3 = sld [smem:[#allocation0]]
  $region18: #{dice_bce_loss.1} parent=0
    _
  %s5 = ssub.s32 1, %s3
  %s6 = scalar_select 0, %s5, %s3
  // Predicated region
  $region2: #{dice_bce_loss.1} parent=0 // pred_check
    _
  $region3: #{dice_bce_loss.1} parent=0 // pred_check_branch
    %8 = sbr.rel (0) target = $region5
  $region4: #{dice_bce_loss.1} parent=0 // pred_region
    _
  $region5: #{dice_bce_loss.1} parent=0 // pred_fallthru
    _
  // Predicated region
  $region6: #{dice_bce_loss.1} parent=0 // pred_check
    _
  $region7: #{dice_bce_loss.1} parent=0 // pred_check_branch
    %10 = sbr.rel (0) target = $region9
  $region8: #{dice_bce_loss.1} parent=0 // pred_region
    _
  $region9: #{dice_bce_loss.1} parent=0 // pred_fallthru
    _
  %v11 = vld [vmem:[%s0] sm:$0xff]
  %v12 = vld [vmem:[%s0 + $0x8] sm:$0xff]
  %v13 = vld [vmem:[%s1] sm:$0xff]
  %v14 = vld [vmem:[%s1 + $0x8] sm:$0xff]
  %v15 = vand.u32 2147483647, %v11
  %v16 = vand.u32 2147483647, %v12
  %v17 = vsub.f32 0.0, %v15
  %v18 = vsub.f32 0.0, %v16
  %v19 = vmul.f32 %v17, 1.442695
  %v20 = vpow.pop %v19
  %v21 = vmul.f32 %v18, 1.442695
  %v22 = vpow.pop %v21
  %v23 = vadd.f32 %v20, 1.0
  %v24 = vadd.f32 %v22, 1.0
  %v25 = vlog2.pop %v23
  %v26 = vmul.f32 %v25, 0.6931472
  %v27 = vlog2.pop %v24
  %v28 = vmul.f32 %v27, 0.6931472
  %v29 = vrcp.pop %v23
  %v30 = vmul.f32 %v23, %v29
  %v31 = vsub.f32 1.0, %v30
  %v32 = vmul.f32 %v29, %v31
  %v33 = vadd.f32 %v29, %v32
  %vm34 = vweird.f32 %v23
  %vm35 = vweird.f32 %v29
  %vm36 = vmor %vm34, %vm35
  %v37 = vsel %vm36, %v29, %v33
  %v38 = vand.u32 2147483647, %v23
  %vm39 = vcmp.eq.f32.partialorder %v38, 8.507059e+37
  %v40 = vand.u32 %v23, 2147483648
  %v41 = vor.u32 1.1754944e-38, %v40
  %v42 = vsel %vm39, %v41, %v37
  %v43 = vmul.f32 1.0, %v42
  %v44 = vrcp.pop %v24
  %v45 = vmul.f32 %v24, %v44
  %v46 = vsub.f32 1.0, %v45
  %v47 = vmul.f32 %v44, %v46
  %v48 = vadd.f32 %v44, %v47
  %vm49 = vweird.f32 %v24
  %vm50 = vweird.f32 %v44
  %vm51 = vmor %vm49, %vm50
  %v52 = vsel %vm51, %v44, %v48
  %v53 = vand.u32 2147483647, %v24
  %vm54 = vcmp.eq.f32.partialorder %v53, 8.507059e+37
  %v55 = vand.u32 %v24, 2147483648
  %v56 = vor.u32 1.1754944e-38, %v55
  %v57 = vsel %vm54, %v56, %v52
  %v58 = vmul.f32 1.0, %v57
  %vm59 = vcmp.ge.f32.partialorder %v11, 0.0
  %vm60 = vcmp.ge.f32.partialorder %v12, 0.0
  %v61 = vmul.f32 %v20, %v43
  %v62 = vmul.f32 %v22, %v58
  %v63 = vsel %vm59, %v43, %v61
  %v64 = vsel %vm60, %v58, %v62
  %v65 = vsub.f32 0.0, %v11
  %v66 = vsub.f32 0.0, %v12
  %v67 = vmax.f32 %v65, 0.0
  %v68 = vmax.f32 %v66, 0.0
  %v69 = vadd.f32 %v67, %v26
  %v70 = vadd.f32 %v68, %v28
  %v71 = vsub.f32 0.0, %v69
  %v72 = vsub.f32 0.0, %v70
  %v73 = vmax.f32 %v71, -100.0
  %v74 = vmax.f32 %v72, -100.0
  %v75 = vmax.f32 %v11, 0.0
  %v76 = vmax.f32 %v12, 0.0
  %v77 = vadd.f32 %v75, %v26
  %v78 = vadd.f32 %v76, %v28
  %v79 = vsub.f32 0.0, %v77
  %v80 = vsub.f32 0.0, %v78
  %v81 = vmax.f32 %v79, -100.0
  %v82 = vmax.f32 %v80, -100.0
  %v83 = vmul.f32 %v13, %v73
  %v84 = vmul.f32 %v14, %v74
  %v85 = vsub.f32 1.0, %v13
  %v86 = vsub.f32 1.0, %v14
  %v87 = vmul.f32 %v85, %v81
  %v88 = vmul.f32 %v86, %v82
  %v89 = vadd.f32 %v83, %v87
  %v90 = vadd.f32 %v84, %v88
  %v91 = vsub.f32 0.0, %v89
  %v92 = vsub.f32 0.0, %v90
  %v93 = vmul.f32 %v63, %v13
  %v94 = vmul.f32 %v64, %v14
  %v95 = vadd.f32 %v93, %v94
  %v96 = vrot.slane %v95, 4
  %v97 = vadd.f32 %v95, %v96
  %v98 = vrot.slane %v97, 2
  %v99 = vadd.f32 %v97, %v98
  %v100 = vrot.slane %v99, 1
  %v101 = vadd.f32 %v99, %v100
  %v102 = vadd.f32 %v63, %v64
  %v103 = vrot.slane %v102, 4
  %v104 = vadd.f32 %v102, %v103
  %v105 = vrot.slane %v104, 2
  %v106 = vadd.f32 %v104, %v105
  %v107 = vrot.slane %v106, 1
  %v108 = vadd.f32 %v106, %v107
  %v109 = vadd.f32 %v13, %v14
  %v110 = vrot.slane %v109, 4
  %v111 = vadd.f32 %v109, %v110
  %v112 = vrot.slane %v111, 2
  %v113 = vadd.f32 %v111, %v112
  %v114 = vrot.slane %v113, 1
  %v115 = vadd.f32 %v113, %v114
  %v116 = vadd.f32 %v91, %v92
  %v117 = vrot.slane %v116, 4
  %v118 = vadd.f32 %v116, %v117
  %v119 = vrot.slane %v118, 2
  %v120 = vadd.f32 %v118, %v119
  %v121 = vrot.slane %v120, 1
  %v122 = vadd.f32 %v120, %v121
  %vm123 = vcmask 1040384
  %v124 = vsel %vm123, %v101, %v108
  %vm125 = vcmask 1041408
  %v126 = vsel %vm125, %v124, %v115
  %vm127 = vcmask 1042432
  %v128 = vsel %vm127, %v126, %v122
  %129 = vst [vmem:[%s2] sm:$0xf] %v128
  // Predicated region
  $region10: #{dice_bce_loss.1} parent=0 // pred_check
    _
  $region11: #{dice_bce_loss.1} parent=0 // pred_check_branch
    %131 = sbr.rel (0) target = $region13
  $region12: #{dice_bce_loss.1} parent=0 // pred_region
    _
  $region13: #{dice_bce_loss.1} parent=0 // pred_fallthru
    _
  // Predicated region
  $region14: #{dice_bce_loss.1} parent=0 // pred_check
    _
  $region15: #{dice_bce_loss.1} parent=0 // pred_check_branch
    %133 = sbr.rel (0) target = $region17
  $region16: #{dice_bce_loss.1} parent=0 // pred_region
    _
  $region17: #{dice_bce_loss.1} parent=0 // pred_fallthru
    _

</llo_original>
